<compile_context>
chip_gen: v7x
topology: tpu7x:2x2x1
jax: 0.10.0
libtpu: 0.0.40
codegen_flags: <defaults>
</compile_context>

<pallas_src>
import math

import jax
import jax.numpy as jnp
from jax.experimental import pallas as pl
from jax.experimental.pallas import tpu as pltpu


def _round_up(x: int, m: int) -> int:
    return ((x + m - 1) // m) * m


def _masked_fill_kernel(spikes_ref, keep_ref, expand_ref, out_ref):
    # spikes_ref: (tR, C) flat spike rows, C = k * P*Q (multiple of 128)
    # keep_ref:   (tR, k) per-patch keep factor (1.0 keep, 0.0 zero-out)
    # expand_ref: (k, C)  0/1 patch->lane expansion matrix (grid-resident)
    # out_ref:    (tR, C)
    # MXU broadcasts each patch's keep factor across its P*Q lanes; the VPU
    # then does one vmul and stores are unmasked full-width vst.
    keep_rows = jnp.dot(keep_ref[...], expand_ref[...],
                        preferred_element_type=jnp.float32)      # (tR, C)
    out_ref[...] = (spikes_ref[...] * keep_rows).astype(out_ref.dtype)


def masked_fill_pallas(spikes, mask, *, target_block_bytes=2 << 20):
    """spikes: (B, TP, P, Q); mask: (B, TP) bool (True => zero the patch).

    Returns spikes with masked patches zeroed, same shape/dtype.
    """
    B, TP, P, Q = spikes.shape
    PQ = P * Q
    dtype = spikes.dtype
    itemsize = jnp.dtype(dtype).itemsize
    S = B * TP * PQ                                 # total spike elements

    # Row width C: multiple of 128 lanes and of PQ (whole patches per row),
    # grown to >= 512 lanes when possible for lane-dense, low-overhead rows.
    base = (128 * PQ) // math.gcd(128, PQ)          # lcm(128, PQ)
    C = base * max(1, -(-512 // base))              # smallest multiple >= 512
    k = C // PQ                                     # patches per row

    # Row tiling: split the R rows into the minimum number of ~2 MiB blocks,
    # each a multiple of 8 sublanes, so padding stays tiny (usually zero).
    cap = max(8, (target_block_bytes // (C * itemsize)) // 8 * 8)
    R = -(-S // C)                                  # rows needed for S elems
    nblk = -(-R // cap)
    tR = _round_up(-(-R // nblk), 8)
    R_pad = _round_up(R, tR)

    # Per-patch keep factor (tiny: B*TP floats vs B*TP*P*Q spikes).
    keep_flat = (~mask).astype(jnp.float32).reshape(-1)   # (B*TP,)
    spikes_flat = spikes.reshape(-1)

    pad_elems = R_pad * C - S
    if pad_elems:
        # At most one flat pad copy (patch + row alignment handled together).
        spikes_flat = jnp.pad(spikes_flat, (0, pad_elems))
        keep_flat = jnp.pad(keep_flat, (0, R_pad * k - B * TP))
    spikes_rows = spikes_flat.reshape(R_pad, C)     # contiguous reshape
    keep_rows = keep_flat.reshape(R_pad, k)

    # Patch -> lane expansion matrix: E[j, c] = 1 iff lane c belongs to patch j.
    expand = (jax.lax.broadcasted_iota(jnp.int32, (k, C), 1) // PQ ==
              jax.lax.broadcasted_iota(jnp.int32, (k, C), 0)).astype(jnp.float32)

    grid = (R_pad // tR,)
    in_bytes = R_pad * C * itemsize + R_pad * k * 4 + k * C * 4
    out_bytes = R_pad * C * itemsize
    cost = pl.CostEstimate(flops=2 * R_pad * k * C + R_pad * C,
                           transcendentals=0,
                           bytes_accessed=in_bytes + out_bytes)

    out = pl.pallas_call(
        _masked_fill_kernel,
        out_shape=jax.ShapeDtypeStruct((R_pad, C), dtype),
        grid_spec=pltpu.PrefetchScalarGridSpec(
            num_scalar_prefetch=0,
            grid=grid,
            in_specs=[
                pl.BlockSpec((tR, C), lambda r: (r, 0)),   # spikes (lane-dense)
                pl.BlockSpec((tR, k), lambda r: (r, 0)),   # keep factor (tiny)
                pl.BlockSpec((k, C), lambda r: (0, 0)),    # expansion (resident)
            ],
            out_specs=pl.BlockSpec((tR, C), lambda r: (r, 0)),
        ),
        compiler_params=pltpu.CompilerParams(
            dimension_semantics=("parallel",),
            vmem_limit_bytes=32 * 1024 * 1024,
        ),
        cost_estimate=cost,
    )(spikes_rows, keep_rows, expand)
    # TODO(synk): if the downstream encoder consumes bf16, emit bf16 here
    # (out_shape dtype) to halve store-side HBM traffic.

    if pad_elems:
        return out.reshape(-1)[:S].reshape(B, TP, P, Q)
    return out.reshape(B, TP, P, Q)


def mae_mask_forward(batch, mask_ratio, mode="neuron", key=None,
                     eval_mode=False):
    """JAX/Pallas port of MaeMaskManager.forward.

    NOTE: this wrapper does host-side Python-int shape glue (jnp.unique
    counts, encoder_frac) exactly like the PyTorch module; it is meant to run
    eagerly, not under jax.jit (masked_fill_pallas itself is jittable).
    """
    spikes = batch["spike_tokens"]          # (B, T*N, P, Q)
    time_idx = batch["time_idx"]            # (B, T*N) int32
    space_idx = batch["space_idx"]          # (B, T*N) int32
    B, total_patches, P, Q = spikes.shape
    num_temporal_patches = int(jnp.unique(time_idx).shape[0])
    num_spatial_patches = int(jnp.unique(space_idx).shape[0])
    keys = ["spike_tokens", "time_idx", "space_idx", "channel_counts"]

    out = dict(batch)
    if eval_mode:
        out["shuffle"] = jnp.arange(total_patches, dtype=jnp.int32)
        out["encoder_frac"] = total_patches
        for k in keys:
            out[f"{k}_target"] = batch[k]
        return out

    if key is None:
        key = jax.random.PRNGKey(0)

    if mode in ("temporal", "forward-pred"):
        num_to_mask = int(mask_ratio * num_temporal_patches)
        m = jnp.zeros((num_temporal_patches,), jnp.float32)
        # Matches torch `mask[-num_to_mask:] = 1` (num_to_mask==0 masks all).
        start = num_temporal_patches - num_to_mask if num_to_mask > 0 else 0
        m = m.at[start:].set(1.0)
        mask = m[time_idx] > 0.5                                   # (B, TP)
    elif mode == "neuron":
        # TODO(synk): torch.bernoulli draws from torch's global RNG; here we
        # use a deterministic JAX PRNG key instead.
        probs = jnp.full((B, num_spatial_patches), mask_ratio, jnp.float32)
        spatial_mask = jax.random.bernoulli(key, probs)            # (B, NS)
        mask = spatial_mask[:, space_idx[0]]                       # (B, TP)
    elif mode == "random":
        mask = jax.random.bernoulli(
            key, jnp.full((B, total_patches), mask_ratio, jnp.float32))
    else:
        raise ValueError(f"Unknown mode: {mode}")

    mask = mask.astype(bool)
    out["spike_tokens_target_mask"] = mask
    for k in keys:
        if k == "spike_tokens":
            out[f"{k}_target"] = batch[k]
            out[k] = masked_fill_pallas(batch[k], mask)    # Pallas hot path
        else:
            out[f"{k}_target"] = batch[k]
    out["encoder_frac"] = int((1 - mask_ratio) * total_patches)
    out["shuffle"] = jnp.arange(total_patches, dtype=jnp.int32)
    return out


if __name__ == "__main__":
    key = jax.random.PRNGKey(0)
    k_spk, k_mask, k_spk2, k_mask2 = jax.random.split(key, 4)

    # Small shapes: B=2, T=4 temporal patches, N=2 spatial patches, P=4, Q=8
    B, T, N, P, Q = 2, 4, 2, 4, 8
    TP = T * N

    spikes = jax.random.normal(k_spk, (B, TP, P, Q), dtype=jnp.float32)
    time_idx = jnp.tile(
        jnp.repeat(jnp.arange(T, dtype=jnp.int32), N)[None, :], (B, 1))
    space_idx = jnp.tile(
        jnp.tile(jnp.arange(N, dtype=jnp.int32), T)[None, :], (B, 1))
    channel_counts = jnp.full((B, TP), Q, dtype=jnp.int32)

    batch = {
        "spike_tokens": spikes,
        "time_idx": time_idx,
        "space_idx": space_idx,
        "channel_counts": channel_counts,
    }

    # --- full forward (neuron mode) ---
    out = mae_mask_forward(batch, mask_ratio=0.5, mode="neuron", key=k_mask)
    masked = jax.block_until_ready(out["spike_tokens"])
    mask = out["spike_tokens_target_mask"]
    ref = jnp.where(mask[:, :, None, None], 0.0, spikes)
    assert masked.shape == (B, TP, P, Q) and masked.dtype == spikes.dtype
    assert jnp.allclose(masked, ref)
    assert jnp.allclose(out["spike_tokens_target"], spikes)
    assert int(out["encoder_frac"]) == int((1 - 0.5) * TP)
    assert out["shuffle"].shape == (TP,)

    # --- temporal mode exercises the other mask path through the same kernel ---
    out_t = mae_mask_forward(batch, mask_ratio=0.5, mode="temporal", key=k_mask)
    mask_t = out_t["spike_tokens_target_mask"]
    ref_t = jnp.where(mask_t[:, :, None, None], 0.0, spikes)
    assert jnp.allclose(jax.block_until_ready(out_t["spike_tokens"]), ref_t)

    # --- direct kernel check with awkward (non-dividing) patch shapes ---
    B2, TP2, P2, Q2 = 2, 10, 8, 20      # P*Q = 160, TP*B not a multiple of 8
    spikes2 = jax.random.normal(k_spk2, (B2, TP2, P2, Q2), dtype=jnp.float32)
    mask2 = jax.random.bernoulli(k_mask2, 0.4, (B2, TP2))
    out2 = jax.block_until_ready(masked_fill_pallas(spikes2, mask2))
    ref2 = jnp.where(mask2[:, :, None, None], 0.0, spikes2)
    assert out2.shape == spikes2.shape and out2.dtype == spikes2.dtype
    assert jnp.allclose(out2, ref2)

    # --- eval mode passthrough ---
    out_e = mae_mask_forward(batch, mask_ratio=0.5, mode="neuron",
                             eval_mode=True)
    assert jnp.allclose(out_e["spike_tokens_target"], spikes)
    assert int(out_e["encoder_frac"]) == TP

    print("KERNEL_OK")
</pallas_src>

<mosaic_0001>
module attributes {stable_mosaic.version = 11 : i64} {
  func.func @_masked_fill_kernel(%arg0: i32, %arg1: memref<8x512xf32, #tpu.memory_space<vmem>>, %arg2: memref<8x16xf32, #tpu.memory_space<vmem>>, %arg3: memref<16x512xf32, #tpu.memory_space<vmem>>, %arg4: memref<8x512xf32, #tpu.memory_space<vmem>>) attributes {dimension_semantics = [#tpu.dimension_semantics<parallel>], iteration_bounds = array<i64: 1>, scalar_prefetch = 0 : i64, scratch_operands = 0 : i64, tpu.core_type = #tpu.core_type<tc>, window_params = [{transform_indices = @transform_0, window_bounds = array<i64: 8, 512>}, {transform_indices = @transform_1, window_bounds = array<i64: 8, 16>}, {pipeline_mode = #tpu.pipeline_mode<synchronous>, transform_indices = @transform_2, window_bounds = array<i64: 16, 512>}, {transform_indices = @transform_3, window_bounds = array<i64: 8, 512>}]} {
    %c0 = arith.constant 0 : index
    %c0_0 = arith.constant 0 : index
    %0 = vector.load %arg2[%c0, %c0_0] : memref<8x16xf32, #tpu.memory_space<vmem>>, vector<8x16xf32>
    %c0_1 = arith.constant 0 : index
    %c0_2 = arith.constant 0 : index
    %1 = vector.load %arg3[%c0_1, %c0_2] : memref<16x512xf32, #tpu.memory_space<vmem>>, vector<16x512xf32>
    %cst = arith.constant dense<0.000000e+00> : vector<8x512xf32>
    %2 = tpu.matmul %0, %1, %cst {dimension_numbers = #tpu.dot_dimension_numbers<[1], [0], [0], [1], [0, 0, 1, 1], [], []>} : vector<8x16xf32>, vector<16x512xf32>, vector<8x512xf32> -> vector<8x512xf32>
    %c0_3 = arith.constant 0 : index
    %c0_4 = arith.constant 0 : index
    %3 = vector.load %arg1[%c0_3, %c0_4] : memref<8x512xf32, #tpu.memory_space<vmem>>, vector<8x512xf32>
    %4 = arith.mulf %3, %2 : vector<8x512xf32>
    %c0_5 = arith.constant 0 : index
    %c0_6 = arith.constant 0 : index
    %5 = vector.load %arg4[%c0_5, %c0_6] : memref<8x512xf32, #tpu.memory_space<vmem>>, vector<8x512xf32>
    tpu.vector_store %arg4[%c0_5, %c0_6], %4 {strides = array<i32>} : memref<8x512xf32, #tpu.memory_space<vmem>>, vector<8x512xf32>,
    return
  }
  func.func @transform_0(%arg0: i32) -> (i32, i32) {
    %c0_i32 = arith.constant 0 : i32
    %c0_i32_0 = arith.constant 0 : i32
    return %arg0, %c0_i32 : i32, i32
  }
  func.func @transform_1(%arg0: i32) -> (i32, i32) {
    %c0_i32 = arith.constant 0 : i32
    %c0_i32_0 = arith.constant 0 : i32
    return %arg0, %c0_i32 : i32, i32
  }
  func.func @transform_2(%arg0: i32) -> (i32, i32) {
    %c0_i32 = arith.constant 0 : i32
    %c0_i32_0 = arith.constant 0 : i32
    %c0_i32_1 = arith.constant 0 : i32
    return %c0_i32, %c0_i32_0 : i32, i32
  }
  func.func @transform_3(%arg0: i32) -> (i32, i32) {
    %c0_i32 = arith.constant 0 : i32
    %c0_i32_0 = arith.constant 0 : i32
    return %arg0, %c0_i32 : i32, i32
  }
}

</mosaic_0001>

<llo_original>
// kernel: tpu_custom_call.1
$region0: #{tpu_custom_call.1}
  #allocation0 [shape = 'u32[]', space=smem, size = 0x4, offset = 0x4, fixed_abs, tag = 'smem constant byte address 0x4 - core index']
  #allocation1 [shape = 'u32[144,128]{1,0:T(1,128)}', space=vmem, size = 0x12000, scoped, tag = 'internal scratch']
  %s0 = inlined_call_operand.hbm [shape: f32[8,512], index: 0, kind: input, shape index: {}]
  %s1 = inlined_call_operand.hbm [shape: f32[8,16], index: 1, kind: input, shape index: {}]
  %s2 = inlined_call_operand.hbm [shape: f32[16,512], index: 2, kind: input, shape index: {}]
  %s3 = inlined_call_operand.hbm [shape: f32[8,512], index: 3, kind: output, shape index: {}]
  %s4 = sld [smem:[#allocation0]]
  $region34: #{tpu_custom_call.1} parent=0
    _
  %s6 = ssub.s32 1, %s4
  %s7 = scalar_select 0, %s6, %s4
  $region1: #{tpu_custom_call.1} parent=0
    #allocation2 [shape = 'u8[16384]{0}', space=vmem, size = 0x4000, scoped, tag = 'input window, operand 0, single buffered']
    #allocation3 [shape = 's32[1]{0}', space=sflag, size = 0x4, scoped, tag = 'scoped memory for tpu_custom_call.1']
    #allocation4 [shape = 's32[1]{0}', space=sflag, size = 0x4, scoped, tag = 'scoped memory for tpu_custom_call.1']
    #allocation5 [shape = 'u8[4096]{0}', space=vmem, size = 0x1000, scoped, tag = 'input window, operand 1, single buffered']
    #allocation6 [shape = 's32[1]{0}', space=sflag, size = 0x4, scoped, tag = 'scoped memory for tpu_custom_call.1']
    #allocation7 [shape = 'u8[32768]{0}', space=vmem, size = 0x8000, scoped, tag = 'input window, operand 2, single buffered']
    #allocation8 [shape = 'u8[16384]{0}', space=vmem, size = 0x4000, scoped, tag = 'output window, operand 0, single buffered']
    %8 = vsyncpa [#allocation3], 0
    %9 = vsyncpa [#allocation6], 0
    %10 = vsyncpa [#allocation4], 0
    // Predicated region
    $region2: #{tpu_custom_call.1} parent=1 // pred_check
      _
    $region3: #{tpu_custom_call.1} parent=1 // pred_check_branch
      %12 = sbr.rel (0) target = $region5
    $region4: #{tpu_custom_call.1} parent=1 // pred_region
      %s14 = ssub.s32 512, 512
      %15 = vsyncadd [#allocation3], %s14
      %s17 = sshll.u32 [#allocation2], 4
      %s18 = int_to_ptr.vmem [resolvable:$true] %s17
      %20 = dma.hbm_to_vmem [thread:$0]  %s0, 512, %s18, [#allocation3]
    $region5: #{tpu_custom_call.1} parent=1 // pred_fallthru
      _
    // Predicated region
    $region6: #{tpu_custom_call.1} parent=1 // pred_check
      _
    $region7: #{tpu_custom_call.1} parent=1 // pred_check_branch
      %22 = sbr.rel (0) target = $region9
    $region8: #{tpu_custom_call.1} parent=1 // pred_region
      %s24 = ssub.s32 128, 128
      %25 = vsyncadd [#allocation6], %s24
      %s27 = sshll.u32 [#allocation5], 4
      %s28 = int_to_ptr.vmem [resolvable:$true] %s27
      %30 = dma.hbm_to_vmem [thread:$0]  %s1, 128, %s28, [#allocation6]
    $region9: #{tpu_custom_call.1} parent=1 // pred_fallthru
      _
    // Predicated region
    $region10: #{tpu_custom_call.1} parent=1 // pred_check
      _
    $region11: #{tpu_custom_call.1} parent=1 // pred_check_branch
      %32 = sbr.rel (0) target = $region13
    $region12: #{tpu_custom_call.1} parent=1 // pred_region
      %s34 = ssub.s32 1024, 1024
      %35 = vsyncadd [#allocation6], %s34
      %s36 = sshll.u32 [#allocation7], 4
      %s37 = int_to_ptr.vmem [resolvable:$true] %s36
      %42 = dma.hbm_to_vmem [thread:$0]  %s2, 1024, %s37, [#allocation6], 512, 512, 32
    $region13: #{tpu_custom_call.1} parent=1 // pred_fallthru
      _
    // Predicated region
    $region14: #{tpu_custom_call.1} parent=1 // pred_check
      _
    $region15: #{tpu_custom_call.1} parent=1 // pred_check_branch
      %44 = sbr.rel (0) target = $region17
    $region16: #{tpu_custom_call.1} parent=1 // pred_region
      %45 = dma.done [#allocation3], 512
    $region17: #{tpu_custom_call.1} parent=1 // pred_fallthru
      _
    // Predicated region
    $region18: #{tpu_custom_call.1} parent=1 // pred_check
      _
    $region19: #{tpu_custom_call.1} parent=1 // pred_check_branch
      %47 = sbr.rel (0) target = $region21
    $region20: #{tpu_custom_call.1} parent=1 // pred_region
      %48 = dma.done [#allocation6], 128
    $region21: #{tpu_custom_call.1} parent=1 // pred_fallthru
      _
    // Predicated region
    $region22: #{tpu_custom_call.1} parent=1 // pred_check
      _
    $region23: #{tpu_custom_call.1} parent=1 // pred_check_branch
      %50 = sbr.rel (0) target = $region25
    $region24: #{tpu_custom_call.1} parent=1 // pred_region
      %51 = dma.done [#allocation6], 1024
    $region25: #{tpu_custom_call.1} parent=1 // pred_fallthru
      _
    %v52 = vld [vmem:[#allocation5] sm:$0xff]
    %v53 = vld [vmem:[#allocation7] sm:$0xff]
    %v54 = vld [vmem:[#allocation7 + $0x8] sm:$0xff]
    %v55 = vld [vmem:[#allocation7 + $0x10] sm:$0xff]
    %v56 = vld [vmem:[#allocation7 + $0x18] sm:$0xff]
    %v57 = vld [vmem:[#allocation7 + $0x20] sm:$0xff]
    %v58 = vld [vmem:[#allocation7 + $0x28] sm:$0xff]
    %v59 = vld [vmem:[#allocation7 + $0x30] sm:$0xff]
    %v60 = vld [vmem:[#allocation7 + $0x38] sm:$0xff]
    %vm61 = vcmask 130048
    %v63 = vsel %vm61, %v52, 0
    %65 = vmatprep.subr.mxu0 %v54
    %66 = vmatpush1.msra.mxu0 %v53
    %67 = vmatprep.subr.mxu0 %v58
    %68 = vmatpush1.msra.mxu0 %v57
    %69 = vmatprep.subr.mxu0 0.0
    %70 = vmatpush1.msra.mxu0 0.0
    %71 = vmatprep.subr.mxu0 0.0
    %72 = vmatpush1.msra.mxu0 0.0
    %73 = vmatprep.subr.mxu0 0.0
    %74 = vmatpush1.msra.mxu0 0.0
    %75 = vmatprep.subr.mxu0 0.0
    %76 = vmatpush1.msra.mxu0 0.0
    %77 = vmatprep.subr.mxu0 0.0
    %78 = vmatpush1.msra.mxu0 0.0
    %79 = vmatprep.subr.mxu0 0.0
    %80 = vmatpush1.msra.mxu0 0.0
    %81 = vmatprep.subr.mxu0 0.0
    %82 = vmatpush1.msra.mxu0 0.0
    %83 = vmatprep.subr.mxu0 0.0
    %84 = vmatpush1.msra.mxu0 0.0
    %85 = vmatprep.subr.mxu0 0.0
    %86 = vmatpush1.msra.mxu0 0.0
    %87 = vmatprep.subr.mxu0 0.0
    %88 = vmatpush1.msra.mxu0 0.0
    %89 = vmatprep.subr.mxu0 0.0
    %90 = vmatpush1.msra.mxu0 0.0
    %91 = vmatprep.subr.mxu0 0.0
    %92 = vmatpush1.msra.mxu0 0.0
    %93 = vmatprep.subr.mxu0 0.0
    %94 = vmatpush1.msra.mxu0 0.0
    %95 = vmatprep.subr.mxu0 0.0
    %96 = vmatpush1.msra.mxu0 0.0
    %97 = vmatprep.subr.mxu0 0.0
    %98 = vmatpush1.msra.mxu0 0.0
    %99 = vmatprep.subr.mxu0 0.0
    %100 = vmatpush1.msra.mxu0 0.0
    %101 = vmatprep.subr.mxu0 0.0
    %102 = vmatpush1.msra.mxu0 0.0
    %103 = vmatprep.subr.mxu0 0.0
    %104 = vmatpush1.msra.mxu0 0.0
    %105 = vmatprep.subr.mxu0 0.0
    %106 = vmatpush1.msra.mxu0 0.0
    %107 = vmatprep.subr.mxu0 0.0
    %108 = vmatpush1.msra.mxu0 0.0
    %109 = vmatprep.subr.mxu0 0.0
    %110 = vmatpush1.msra.mxu0 0.0
    %111 = vmatprep.subr.mxu0 0.0
    %112 = vmatpush1.msra.mxu0 0.0
    %113 = vmatprep.subr.mxu0 0.0
    %114 = vmatpush1.msra.mxu0 0.0
    %115 = vmatprep.subr.mxu0 0.0
    %116 = vmatpush1.msra.mxu0 0.0
    %117 = vmatprep.subr.mxu0 0.0
    %118 = vmatpush1.msra.mxu0 0.0
    %119 = vmatprep.subr.mxu0 0.0
    %120 = vmatpush1.msra.mxu0 0.0
    %121 = vmatprep.subr.mxu0 0.0
    %122 = vmatpush1.msra.mxu0 0.0
    %123 = vmatprep.subr.mxu0 0.0
    %124 = vmatpush1.msra.mxu0 0.0
    %125 = vmatprep.subr.mxu0 0.0
    %126 = vmatpush1.msra.mxu0 0.0
    %127 = vmatprep.subr.mxu0 0.0
    %128 = vmatpush1.msra.mxu0 0.0
    %129 = vmatprep.mubr.f32.mxu0 0.0
    %130 = vmatmul.mubr.f32.gmra.mrb[0].mxu0 %v63
    %v131 = vpop.f32.mrb[0].mxu0
    %v132 = vadd.f32 0.0, %v131
    %v133 = vpop.f32.mrb[0].mxu0
    %v134 = vadd.f32 0.0, %v133
    %135 = vdwg.mxu0
    %136 = vmatprep.subr.mxu0 %v56
    %137 = vmatpush1.msra.mxu0 %v55
    %138 = vmatprep.subr.mxu0 %v60
    %139 = vmatpush1.msra.mxu0 %v59
    %140 = vmatprep.subr.mxu0 0.0
    %141 = vmatpush1.msra.mxu0 0.0
    %142 = vmatprep.subr.mxu0 0.0
    %143 = vmatpush1.msra.mxu0 0.0
    %144 = vmatprep.subr.mxu0 0.0
    %145 = vmatpush1.msra.mxu0 0.0
    %146 = vmatprep.subr.mxu0 0.0
    %147 = vmatpush1.msra.mxu0 0.0
    %148 = vmatprep.subr.mxu0 0.0
    %149 = vmatpush1.msra.mxu0 0.0
    %150 = vmatprep.subr.mxu0 0.0
    %151 = vmatpush1.msra.mxu0 0.0
    %152 = vmatprep.subr.mxu0 0.0
    %153 = vmatpush1.msra.mxu0 0.0
    %154 = vmatprep.subr.mxu0 0.0
    %155 = vmatpush1.msra.mxu0 0.0
    %156 = vmatprep.subr.mxu0 0.0
    %157 = vmatpush1.msra.mxu0 0.0
    %158 = vmatprep.subr.mxu0 0.0
    %159 = vmatpush1.msra.mxu0 0.0
    %160 = vmatprep.subr.mxu0 0.0
    %161 = vmatpush1.msra.mxu0 0.0
    %162 = vmatprep.subr.mxu0 0.0
    %163 = vmatpush1.msra.mxu0 0.0
    %164 = vmatprep.subr.mxu0 0.0
    %165 = vmatpush1.msra.mxu0 0.0
    %166 = vmatprep.subr.mxu0 0.0
    %167 = vmatpush1.msra.mxu0 0.0
    %168 = vmatprep.subr.mxu0 0.0
    %169 = vmatpush1.msra.mxu0 0.0
    %170 = vmatprep.subr.mxu0 0.0
    %171 = vmatpush1.msra.mxu0 0.0
    %172 = vmatprep.subr.mxu0 0.0
    %173 = vmatpush1.msra.mxu0 0.0
    %174 = vmatprep.subr.mxu0 0.0
    %175 = vmatpush1.msra.mxu0 0.0
    %176 = vmatprep.subr.mxu0 0.0
    %177 = vmatpush1.msra.mxu0 0.0
    %178 = vmatprep.subr.mxu0 0.0
    %179 = vmatpush1.msra.mxu0 0.0
    %180 = vmatprep.subr.mxu0 0.0
    %181 = vmatpush1.msra.mxu0 0.0
    %182 = vmatprep.subr.mxu0 0.0
    %183 = vmatpush1.msra.mxu0 0.0
    %184 = vmatprep.subr.mxu0 0.0
    %185 = vmatpush1.msra.mxu0 0.0
    %186 = vmatprep.subr.mxu0 0.0
    %187 = vmatpush1.msra.mxu0 0.0
    %188 = vmatprep.subr.mxu0 0.0
    %189 = vmatpush1.msra.mxu0 0.0
    %190 = vmatprep.subr.mxu0 0.0
    %191 = vmatpush1.msra.mxu0 0.0
    %192 = vmatprep.subr.mxu0 0.0
    %193 = vmatpush1.msra.mxu0 0.0
    %194 = vmatprep.subr.mxu0 0.0
    %195 = vmatpush1.msra.mxu0 0.0
    %196 = vmatprep.subr.mxu0 0.0
    %197 = vmatpush1.msra.mxu0 0.0
    %198 = vmatprep.subr.mxu0 0.0
    %199 = vmatpush1.msra.mxu0 0.0
    %200 = vmatprep.mubr.f32.mxu0 0.0
    %201 = vmatmul.mubr.f32.gmra.mrb[0].mxu0 %v63
    %v202 = vpop.f32.mrb[0].mxu0
    %v203 = vadd.f32 0.0, %v202
    %v204 = vpop.f32.mrb[0].mxu0
    %v205 = vadd.f32 0.0, %v204
    %206 = vdwg.mxu0
    %v207 = vld [vmem:[#allocation2] sm:$0xff]
    %v208 = vld [vmem:[#allocation2 + $0x8] sm:$0xff]
    %v209 = vld [vmem:[#allocation2 + $0x10] sm:$0xff]
    %v210 = vld [vmem:[#allocation2 + $0x18] sm:$0xff]
    %v211 = vmul.f32 %v207, %v132
    %v212 = vmul.f32 %v208, %v134
    %v213 = vmul.f32 %v209, %v203
    %v214 = vmul.f32 %v210, %v205
    %215 = vst [vmem:[#allocation8] sm:$0xff] %v211
    %216 = vst [vmem:[#allocation8 + $0x8] sm:$0xff] %v212
    %217 = vst [vmem:[#allocation8 + $0x10] sm:$0xff] %v213
    %218 = vst [vmem:[#allocation8 + $0x18] sm:$0xff] %v214
    // Predicated region
    $region26: #{tpu_custom_call.1} parent=1 // pred_check
      _
    $region27: #{tpu_custom_call.1} parent=1 // pred_check_branch
      %220 = sbr.rel (0) target = $region29
    $region28: #{tpu_custom_call.1} parent=1 // pred_region
      %s222 = ssub.s32 512, 512
      %223 = vsyncadd [#allocation4], %s222
      %s225 = sshll.u32 [#allocation8], 4
      %s226 = int_to_ptr.vmem [resolvable:$true] %s225
      %228 = dma.vmem_to_hbm [thread:$0]  %s226, 512, %s3, [#allocation4]
    $region29: #{tpu_custom_call.1} parent=1 // pred_fallthru
      _
    // Predicated region
    $region30: #{tpu_custom_call.1} parent=1 // pred_check
      _
    $region31: #{tpu_custom_call.1} parent=1 // pred_check_branch
      %230 = sbr.rel (0) target = $region33
    $region32: #{tpu_custom_call.1} parent=1 // pred_region
      %231 = dma.done [#allocation4], 512
    $region33: #{tpu_custom_call.1} parent=1 // pred_fallthru
      _
    %232 = vsyncpa [#allocation3], 1
    %233 = vsyncpa [#allocation6], 1
    %234 = vsyncpa [#allocation4], 1

</llo_original>
